<compile_context>
chip_gen: v5e
topology: v5e:2x2
jax: 0.10.0
libtpu: 0.0.40
codegen_flags: <defaults>
</compile_context>

<pallas_src>
import functools

import jax
import jax.numpy as jnp
from jax.experimental import pallas as pl
from jax.experimental.pallas import tpu as pltpu


# ----------------------------------------------------------------------------
# Kernels
# ----------------------------------------------------------------------------
def _fused_kernel(feat_ref, w1t_ref, b1_ref, w2t_ref, b2_ref, wred_ref,
                  out_ref, *, feat_channels, stacked_convs, inv_hw):
    F = feat_channels
    S = stacked_convs
    C = F * S

    feat = feat_ref[...]                              # (Bt, C, HW) native dtype

    # 1) adaptive_avg_pool2d -> (Bt, C).  f32 accumulation; the lane-axis sum
    #    is masked by Mosaic to the logical HW extent (no pad, no f32 copy of
    #    the tile when feat is already f32).
    avg = jnp.sum(feat, axis=-1, dtype=jnp.float32) * inv_hw          # (Bt, C)

    # 2) layer attention MLP (two 1x1 convs) in f32: ReLU -> Sigmoid.
    z1 = jnp.maximum(
        jnp.dot(avg, w1t_ref[...], preferred_element_type=jnp.float32)
        + b1_ref[...], 0.0)                                           # (Bt, hid)
    att = jax.nn.sigmoid(
        jnp.dot(z1, w2t_ref[...], preferred_element_type=jnp.float32)
        + b2_ref[...])                                                # (Bt, S)

    # 3) expand attention over channel groups: scale[b, c] = att[b, c // F]
    #    (VPU one-hot expansion + small sublane reduce, no int division).
    sub = jax.lax.broadcasted_iota(jnp.int32, (S, C), 0)
    lane = jax.lax.broadcasted_iota(jnp.int32, (S, C), 1)
    grp = ((lane >= sub * F) & (lane < (sub + 1) * F)).astype(jnp.float32)
    scale = jnp.sum(att[:, :, None] * grp[None], axis=1)              # (Bt, C)

    # 4) fold attention into the 1x1 reduction weight, then ONE fused
    #    (F, C) x (C, HW) contraction per batch row with f32 accumulation.
    w_scaled = (wred_ref[...][None] * scale[:, None, :]).astype(feat.dtype)
    out = jnp.einsum('bfc,bcx->bfx', w_scaled, feat,
                     preferred_element_type=jnp.float32)              # (Bt,F,HW)

    # 5) norm_cfg=None -> no norm; reduction bias never applied (torch quirk);
    #    just ReLU.
    out_ref[...] = jnp.maximum(out, 0.0).astype(out_ref.dtype)


def _chunked_kernel(wsc_ref, feat_ref, out_ref):
    # Attention already folded into wsc (per-batch scaled 1x1 weight); this
    # kernel only streams feat HW-chunks and matmuls them.
    out = jnp.dot(wsc_ref[0], feat_ref[0], preferred_element_type=jnp.float32)
    out_ref[0] = jnp.maximum(out, 0.0).astype(out_ref.dtype)


# ----------------------------------------------------------------------------
# Sizing helpers
# ----------------------------------------------------------------------------
def _vmem_budget_bytes():
    cap = 64 * 1024 * 1024                  # conservative default (v7x per-TC)
    try:
        info = pltpu.get_tpu_info()
        v = getattr(info, "vmem_capacity_bytes", None)
        if v:
            cap = int(v)
    except Exception:
        pass
    # Leave ~25% headroom for compiler-internal scratch / semaphores / regalloc
    # (~48 MiB on v7x, ~96 MiB on v5e/v6e).
    return (cap * 3) // 4


def _pick_batch_tile(b, per_row_bytes, budget_bytes):
    """Largest divisor of b that fits VMEM, keeps >=2 grid steps when b >= 2
    (so both v7x TensorCores get work) and targets ~2 MiB blocks to amortize
    the per-grid-step overhead on small feature maps."""
    per_row_bytes = max(per_row_bytes, 1)
    fit = max(1, budget_bytes // per_row_bytes)
    steps_cap = max(1, b // 2) if b >= 2 else 1
    size_target = max(1, -(-(2 << 20) // per_row_bytes))
    target = max(1, min(fit, steps_cap, size_target, b))
    bt = 1
    for d in range(1, b + 1):
        if b % d == 0 and d <= target:
            bt = d
    return bt


# ----------------------------------------------------------------------------
# Wrapper
# ----------------------------------------------------------------------------
def task_decomposition(feat, params, avg_feat=None, *, feat_channels,
                       stacked_convs, out_dtype=None, force_hw_chunk=None):
    b, c, h, w = feat.shape
    F_out = feat_channels
    S = stacked_convs
    assert c == F_out * S
    hw = h * w

    out_dtype = feat.dtype if out_dtype is None else jnp.dtype(out_dtype)
    in_isz = feat.dtype.itemsize
    out_isz = jnp.dtype(out_dtype).itemsize

    # Metadata-only reshape (collapses the two contiguous minor dims): no cast,
    # no pad -> feat is streamed straight from HBM exactly once by the kernel.
    feat3 = feat.reshape(b, c, hw)

    # Tiny parameter re-layouts (one-time, negligible next to feat traffic).
    w1t = params["la_w1"].T.astype(jnp.float32)            # (C, hid)
    b1 = params["la_b1"].reshape(1, -1).astype(jnp.float32)
    w2t = params["la_w2"].T.astype(jnp.float32)            # (hid, S)
    b2 = params["la_b2"].reshape(1, -1).astype(jnp.float32)
    wred = params["red_w"].astype(jnp.float32)             # (F, C)
    param_bytes = sum(int(p.size) * 4 for p in (w1t, b1, w2t, b2, wred))

    budget = _vmem_budget_bytes()
    # Pooling accumulates in f32; only non-f32 inputs need an upcast temp.
    pool_tmp = 0 if feat.dtype == jnp.float32 else c * hw * 4
    per_row = hw * (2 * c * in_isz + 2 * F_out * out_isz + F_out * 4) + pool_tmp
    overhead = 4 * param_bytes + (2 << 20)

    flops = 2 * b * F_out * c * hw
    bytes_accessed = b * hw * (c * in_isz + F_out * out_isz) + param_bytes

    fused_ok = (avg_feat is None and force_hw_chunk is None
                and per_row + overhead <= budget)

    if fused_ok:
        # -------- single-pass fused path: pool + MLP + matmul per batch tile
        bt = _pick_batch_tile(b, per_row, budget - overhead)
        needed = bt * per_row + overhead
        vmem_limit = int(min(max(needed, 32 << 20), budget))
        kernel = functools.partial(_fused_kernel, feat_channels=F_out,
                                   stacked_convs=S, inv_hw=1.0 / float(hw))
        out = pl.pallas_call(
            kernel,
            out_shape=jax.ShapeDtypeStruct((b, F_out, hw), out_dtype),
            grid=(b // bt,),
            in_specs=[
                pl.BlockSpec((bt, c, hw), lambda i: (i, 0, 0)),
                pl.BlockSpec(w1t.shape, lambda i: (0, 0)),
                pl.BlockSpec(b1.shape, lambda i: (0, 0)),
                pl.BlockSpec(w2t.shape, lambda i: (0, 0)),
                pl.BlockSpec(b2.shape, lambda i: (0, 0)),
                pl.BlockSpec(wred.shape, lambda i: (0, 0)),
            ],
            out_specs=pl.BlockSpec((bt, F_out, hw), lambda i: (i, 0, 0)),
            compiler_params=pltpu.CompilerParams(
                dimension_semantics=("parallel",),
                vmem_limit_bytes=vmem_limit),
            cost_estimate=pl.CostEstimate(
                flops=flops, transcendentals=b * S,
                bytes_accessed=bytes_accessed),
        )(feat3, w1t, b1, w2t, b2, wred)
    else:
        # -------- HW-chunked fallback: large levels / caller-provided avg_feat
        if avg_feat is None:
            avg = jnp.mean(feat.astype(jnp.float32), axis=(2, 3))     # (b, C)
        else:
            avg = avg_feat.reshape(b, c).astype(jnp.float32)
        z1 = jax.nn.relu(avg @ w1t + b1)
        att = jax.nn.sigmoid(z1 @ w2t + b2)                           # (b, S)
        scale = jnp.repeat(att, F_out, axis=1)                        # (b, C)
        w_scaled = (wred[None] * scale[:, None, :]).astype(feat.dtype)  # (b,F,C)

        per_pixel = 2 * (c * in_isz + F_out * out_isz) + F_out * 4
        if force_hw_chunk is not None:
            hw_chunk = int(force_hw_chunk)
        else:
            hw_chunk = max(128, ((budget - overhead) // per_pixel) // 128 * 128)
        hw_chunk = min(hw_chunk, hw)
        n_chunks = -(-hw // hw_chunk)
        needed = hw_chunk * per_pixel + overhead
        vmem_limit = int(min(max(needed, 32 << 20), budget))

        out = pl.pallas_call(
            _chunked_kernel,
            out_shape=jax.ShapeDtypeStruct((b, F_out, hw), out_dtype),
            grid=(b, n_chunks),
            in_specs=[
                pl.BlockSpec((1, F_out, c), lambda i, j: (i, 0, 0)),
                pl.BlockSpec((1, c, hw_chunk), lambda i, j: (i, 0, j)),
            ],
            out_specs=pl.BlockSpec((1, F_out, hw_chunk), lambda i, j: (i, 0, j)),
            compiler_params=pltpu.CompilerParams(
                dimension_semantics=("parallel", "parallel"),
                vmem_limit_bytes=vmem_limit),
            cost_estimate=pl.CostEstimate(
                flops=flops, transcendentals=0,
                bytes_accessed=bytes_accessed + b * F_out * c * in_isz),
        )(w_scaled, feat3)

    return out.reshape(b, F_out, h, w)


# ----------------------------------------------------------------------------
# Reference + params
# ----------------------------------------------------------------------------
def reference(feat, params, *, feat_channels, stacked_convs):
    """Pure-JAX f32 mirror of the torch forward (norm_cfg=None)."""
    Fc = feat_channels
    b, c, h, w = feat.shape
    x = feat.astype(jnp.float32)
    avg = jnp.mean(x, axis=(2, 3))                                      # (b, C)
    z1 = jax.nn.relu(avg @ params["la_w1"].T + params["la_b1"])
    att = jax.nn.sigmoid(z1 @ params["la_w2"].T + params["la_b2"])      # (b, S)
    scale = jnp.repeat(att, Fc, axis=1)                                 # (b, C)
    w_scaled = params["red_w"][None] * scale[:, None, :]                # (b,F,C)
    out = jnp.einsum('bfc,bcx->bfx', w_scaled, x.reshape(b, c, h * w))
    return jax.nn.relu(out).reshape(b, Fc, h, w)


def make_params(key, *, feat_channels, stacked_convs, la_down_rate):
    C = feat_channels * stacked_convs
    hid = C // la_down_rate
    k1, k2, k3 = jax.random.split(key, 3)
    return {
        # layer_attention 1x1 conv weights (out,in) + biases (out,)
        "la_w1": jax.random.normal(k1, (hid, C), jnp.float32) * 0.1,
        "la_b1": jnp.zeros((hid,), jnp.float32),
        "la_w2": jax.random.normal(k2, (stacked_convs, hid), jnp.float32) * 0.1,
        "la_b2": jnp.zeros((stacked_convs,), jnp.float32),
        # reduction_conv weight (F, C, 1, 1) flattened to (F, C)
        "red_w": jax.random.normal(k3, (feat_channels, C), jnp.float32) * 0.01,
    }


if __name__ == "__main__":
    feat_channels = 16
    stacked_convs = 6
    la_down_rate = 8
    C = feat_channels * stacked_convs  # 96

    key = jax.random.PRNGKey(0)
    kp, k1, k2, k3 = jax.random.split(key, 4)
    params = make_params(kp, feat_channels=feat_channels,
                         stacked_convs=stacked_convs,
                         la_down_rate=la_down_rate)

    # (key, b, h, w, out_dtype, force_hw_chunk, use_avg_feat)
    runs = [
        (k1, 2, 16, 16, None,          None, False),  # lane-aligned, fused
        (k2, 2, 13, 20, None,          None, False),  # ragged hw=260, fused
        (k3, 4, 16, 16, jnp.bfloat16,  None, False),  # batch-tile=2, bf16 out
        (k2, 2, 13, 20, None,          128,  False),  # HW-chunked fallback
        (k1, 2, 16, 16, None,          None, True),   # precomputed avg_feat
    ]
    for kf, b, h, w, odt, chunk, use_avg in runs:
        feat = jax.random.normal(kf, (b, C, h, w), jnp.float32)
        avg_feat = (jnp.mean(feat, axis=(2, 3), keepdims=True)
                    if use_avg else None)

        out = task_decomposition(feat, params, avg_feat,
                                 feat_channels=feat_channels,
                                 stacked_convs=stacked_convs,
                                 out_dtype=odt, force_hw_chunk=chunk)
        out = jax.block_until_ready(out)
        assert out.shape == (b, feat_channels, h, w)

        ref = reference(feat, params, feat_channels=feat_channels,
                        stacked_convs=stacked_convs)
        err = float(jnp.max(jnp.abs(out.astype(jnp.float32) - ref)))
        tol = 2e-2 if odt == jnp.bfloat16 else 1e-2
        assert err <= tol, ("mismatch", b, h, w, odt, chunk, err)

    print("KERNEL_OK")
</pallas_src>

<mosaic_0001>
module attributes {stable_mosaic.version = 11 : i64} {
  func.func @_fused_kernel(%arg0: i32, %arg1: memref<1x96x256xf32, #tpu.memory_space<vmem>>, %arg2: memref<96x12xf32, #tpu.memory_space<vmem>>, %arg3: memref<1x12xf32, #tpu.memory_space<vmem>>, %arg4: memref<12x6xf32, #tpu.memory_space<vmem>>, %arg5: memref<1x6xf32, #tpu.memory_space<vmem>>, %arg6: memref<16x96xf32, #tpu.memory_space<vmem>>, %arg7: memref<1x16x256xf32, #tpu.memory_space<vmem>>) attributes {dimension_semantics = [#tpu.dimension_semantics<parallel>], iteration_bounds = array<i64: 2>, scalar_prefetch = 0 : i64, scratch_operands = 0 : i64, tpu.core_type = #tpu.core_type<tc>, window_params = [{transform_indices = @transform_0, window_bounds = array<i64: 1, 96, 256>}, {pipeline_mode = #tpu.pipeline_mode<synchronous>, transform_indices = @transform_1, window_bounds = array<i64: 96, 12>}, {pipeline_mode = #tpu.pipeline_mode<synchronous>, transform_indices = @transform_2, window_bounds = array<i64: 1, 12>}, {pipeline_mode = #tpu.pipeline_mode<synchronous>, transform_indices = @transform_3, window_bounds = array<i64: 12, 6>}, {pipeline_mode = #tpu.pipeline_mode<synchronous>, transform_indices = @transform_4, window_bounds = array<i64: 1, 6>}, {pipeline_mode = #tpu.pipeline_mode<synchronous>, transform_indices = @transform_5, window_bounds = array<i64: 16, 96>}, {transform_indices = @transform_6, window_bounds = array<i64: 1, 16, 256>}]} {
    %c0 = arith.constant 0 : index
    %c0_0 = arith.constant 0 : index
    %c0_1 = arith.constant 0 : index
    %0 = vector.load %arg1[%c0, %c0_0, %c0_1] : memref<1x96x256xf32, #tpu.memory_space<vmem>>, vector<1x96x256xf32>
    %cst = arith.constant dense<0.000000e+00> : vector<1x96xf32>
    %1 = vector.multi_reduction <add>, %0, %cst [2] : vector<1x96x256xf32> to vector<1x96xf32>
    %cst_2 = arith.constant 3.906250e-03 : f32
    %2 = vector.broadcast %cst_2 : f32 to vector<1x96xf32>
    %3 = arith.mulf %1, %2 : vector<1x96xf32>
    %c0_3 = arith.constant 0 : index
    %c0_4 = arith.constant 0 : index
    %4 = vector.load %arg2[%c0_3, %c0_4] : memref<96x12xf32, #tpu.memory_space<vmem>>, vector<96x12xf32>
    %cst_5 = arith.constant dense<0.000000e+00> : vector<1x12xf32>
    %5 = tpu.matmul %3, %4, %cst_5 {dimension_numbers = #tpu.dot_dimension_numbers<[1], [0], [0], [1], [0, 0, 1, 1], [], []>} : vector<1x96xf32>, vector<96x12xf32>, vector<1x12xf32> -> vector<1x12xf32>
    %c0_6 = arith.constant 0 : index
    %c0_7 = arith.constant 0 : index
    %6 = vector.load %arg3[%c0_6, %c0_7] : memref<1x12xf32, #tpu.memory_space<vmem>>, vector<1x12xf32>
    %7 = arith.addf %5, %6 : vector<1x12xf32>
    %cst_8 = arith.constant 0.000000e+00 : f32
    %8 = vector.broadcast %cst_8 : f32 to vector<1x12xf32>
    %9 = arith.maximumf %7, %8 : vector<1x12xf32>
    %c0_9 = arith.constant 0 : index
    %c0_10 = arith.constant 0 : index
    %10 = vector.load %arg4[%c0_9, %c0_10] : memref<12x6xf32, #tpu.memory_space<vmem>>, vector<12x6xf32>
    %cst_11 = arith.constant dense<0.000000e+00> : vector<1x6xf32>
    %11 = tpu.matmul %9, %10, %cst_11 {dimension_numbers = #tpu.dot_dimension_numbers<[1], [0], [0], [1], [0, 0, 1, 1], [], []>} : vector<1x12xf32>, vector<12x6xf32>, vector<1x6xf32> -> vector<1x6xf32>
    %c0_12 = arith.constant 0 : index
    %c0_13 = arith.constant 0 : index
    %12 = vector.load %arg5[%c0_12, %c0_13] : memref<1x6xf32, #tpu.memory_space<vmem>>, vector<1x6xf32>
    %13 = arith.addf %11, %12 : vector<1x6xf32>
    %14 = arith.negf %13 : vector<1x6xf32>
    %15 = math.exp %14 : vector<1x6xf32>
    %cst_14 = arith.constant 1.000000e+00 : f32
    %16 = vector.broadcast %cst_14 : f32 to vector<1x6xf32>
    %17 = arith.addf %16, %15 : vector<1x6xf32>
    %18 = arith.divf %16, %17 : vector<1x6xf32>
    %19 = tpu.iota {dimensions = array<i32: 0>} : vector<6x96xi32>
    %20 = tpu.iota {dimensions = array<i32: 1>} : vector<6x96xi32>
    %c16_i32 = arith.constant 16 : i32
    %21 = vector.broadcast %c16_i32 : i32 to vector<6x96xi32>
    %22 = arith.muli %19, %21 : vector<6x96xi32>
    %23 = arith.cmpi sge, %20, %22 : vector<6x96xi32>
    %c1_i32 = arith.constant 1 : i32
    %24 = vector.broadcast %c1_i32 : i32 to vector<6x96xi32>
    %25 = arith.addi %19, %24 : vector<6x96xi32>
    %c16_i32_15 = arith.constant 16 : i32
    %26 = vector.broadcast %c16_i32_15 : i32 to vector<6x96xi32>
    %27 = arith.muli %25, %26 : vector<6x96xi32>
    %28 = arith.cmpi slt, %20, %27 : vector<6x96xi32>
    %29 = arith.andi %23, %28 : vector<6x96xi1>
    %30 = arith.extui %29 : vector<6x96xi1> to vector<6x96xi32>
    %31 = arith.sitofp %30 : vector<6x96xi32> to vector<6x96xf32>
    %32 = vector.shape_cast %18 : vector<1x6xf32> to vector<1x6x1xf32>
    %33 = vector.shape_cast %31 : vector<6x96xf32> to vector<1x6x96xf32>
    %34 = vector.broadcast %32 : vector<1x6x1xf32> to vector<1x6x96xf32>
    %35 = arith.mulf %34, %33 : vector<1x6x96xf32>
    %cst_16 = arith.constant dense<0.000000e+00> : vector<1x96xf32>
    %36 = vector.multi_reduction <add>, %35, %cst_16 [1] : vector<1x6x96xf32> to vector<1x96xf32>
    %c0_17 = arith.constant 0 : index
    %c0_18 = arith.constant 0 : index
    %37 = vector.load %arg6[%c0_17, %c0_18] : memref<16x96xf32, #tpu.memory_space<vmem>>, vector<16x96xf32>
    %38 = vector.shape_cast %37 : vector<16x96xf32> to vector<1x16x96xf32>
    %39 = vector.shape_cast %36 : vector<1x96xf32> to vector<1x1x96xf32>
    %40 = vector.broadcast %39 : vector<1x1x96xf32> to vector<1x16x96xf32>
    %41 = arith.mulf %38, %40 : vector<1x16x96xf32>
    "tpu.trace_start"() <{level = 10 : i32, message = "bfc,bcx->bfx"}> : () -> ()
    %cst_19 = arith.constant dense<0.000000e+00> : vector<1x16x256xf32>
    %42 = tpu.matmul %41, %0, %cst_19 {dimension_numbers = #tpu.dot_dimension_numbers<[2], [1], [1], [2], [0, 0, 0, 1, 1, 2], [0], [0]>} : vector<1x16x96xf32>, vector<1x96x256xf32>, vector<1x16x256xf32> -> vector<1x16x256xf32>
    "tpu.trace_stop"() : () -> ()
    %cst_20 = arith.constant 0.000000e+00 : f32
    %43 = vector.broadcast %cst_20 : f32 to vector<1x16x256xf32>
    %44 = arith.maximumf %42, %43 : vector<1x16x256xf32>
    %c0_21 = arith.constant 0 : index
    %c0_22 = arith.constant 0 : index
    %c0_23 = arith.constant 0 : index
    %45 = vector.load %arg7[%c0_21, %c0_22, %c0_23] : memref<1x16x256xf32, #tpu.memory_space<vmem>>, vector<1x16x256xf32>
    tpu.vector_store %arg7[%c0_21, %c0_22, %c0_23], %44 {strides = array<i32>} : memref<1x16x256xf32, #tpu.memory_space<vmem>>, vector<1x16x256xf32>,
    return
  }
  func.func @transform_0(%arg0: i32) -> (i32, i32, i32) {
    %c0_i32 = arith.constant 0 : i32
    %c0_i32_0 = arith.constant 0 : i32
    %c0_i32_1 = arith.constant 0 : i32
    return %arg0, %c0_i32, %c0_i32_0 : i32, i32, i32
  }
  func.func @transform_1(%arg0: i32) -> (i32, i32) {
    %c0_i32 = arith.constant 0 : i32
    %c0_i32_0 = arith.constant 0 : i32
    %c0_i32_1 = arith.constant 0 : i32
    return %c0_i32, %c0_i32_0 : i32, i32
  }
  func.func @transform_2(%arg0: i32) -> (i32, i32) {
    %c0_i32 = arith.constant 0 : i32
    %c0_i32_0 = arith.constant 0 : i32
    %c0_i32_1 = arith.constant 0 : i32
    return %c0_i32, %c0_i32_0 : i32, i32
  }
  func.func @transform_3(%arg0: i32) -> (i32, i32) {
    %c0_i32 = arith.constant 0 : i32
    %c0_i32_0 = arith.constant 0 : i32
    %c0_i32_1 = arith.constant 0 : i32
    return %c0_i32, %c0_i32_0 : i32, i32
  }
  func.func @transform_4(%arg0: i32) -> (i32, i32) {
    %c0_i32 = arith.constant 0 : i32
    %c0_i32_0 = arith.constant 0 : i32
    %c0_i32_1 = arith.constant 0 : i32
    return %c0_i32, %c0_i32_0 : i32, i32
  }
  func.func @transform_5(%arg0: i32) -> (i32, i32) {
    %c0_i32 = arith.constant 0 : i32
    %c0_i32_0 = arith.constant 0 : i32
    %c0_i32_1 = arith.constant 0 : i32
    return %c0_i32, %c0_i32_0 : i32, i32
  }
  func.func @transform_6(%arg0: i32) -> (i32, i32, i32) {
    %c0_i32 = arith.constant 0 : i32
    %c0_i32_0 = arith.constant 0 : i32
    %c0_i32_1 = arith.constant 0 : i32
    return %arg0, %c0_i32, %c0_i32_0 : i32, i32, i32
  }
}

</mosaic_0001>

<llo_original>
// kernel: tpu_custom_call.1
$region0: #{tpu_custom_call.1}
  #allocation0 [shape = 'u32[]', space=smem, size = 0x4, offset = 0x4, fixed_abs, tag = 'smem constant byte address 0x4 - core index']
  #allocation1 [shape = 'u32[72,128]{1,0:T(1,128)}', space=vmem, size = 0x9000, scoped, tag = 'internal scratch']
  %s0 = inlined_call_operand.hbm [shape: f32[2,96,256], index: 0, kind: input, shape index: {}]
  %s1 = inlined_call_operand.vmem [shape: f32[96,12], index: 1, kind: input, shape index: {}]
  %s2 = inlined_call_operand.vmem [shape: f32[1,12], index: 2, kind: input, shape index: {}]
  %s3 = inlined_call_operand.vmem [shape: f32[12,6], index: 3, kind: input, shape index: {}]
  %s4 = inlined_call_operand.vmem [shape: f32[1,6], index: 4, kind: input, shape index: {}]
  %s5 = inlined_call_operand.vmem [shape: f32[16,96], index: 5, kind: input, shape index: {}]
  %s6 = inlined_call_operand.hbm [shape: f32[2,16,256], index: 6, kind: output, shape index: {}]
  %s7 = sld [smem:[#allocation0]]
  $region61: #{tpu_custom_call.1} parent=0
    _
  %s9 = ssub.s32 1, %s7
  %s10 = scalar_select 0, %s9, %s7
  $region1: #{tpu_custom_call.1} parent=0
    #allocation2 [shape = 'u8[196608]{0}', space=vmem, size = 0x30000, scoped, tag = 'input window, operand 0']
    #allocation3 [shape = 's32[2]{0}', space=sflag, size = 0x8, scoped, tag = 'scoped memory for tpu_custom_call.1']
    #allocation4 [shape = 's32[2]{0}', space=sflag, size = 0x8, scoped, tag = 'scoped memory for tpu_custom_call.1']
    #allocation5 [shape = 'u8[32768]{0}', space=vmem, size = 0x8000, scoped, tag = 'output window, operand 0']
    %11 = vsyncpa [#allocation3], 0
    %s12 = scalar_lea.sflag [#allocation3], 1
    %13 = vsyncpa %s12, 0
    %14 = vsyncpa [#allocation4], 0
    %s15 = scalar_lea.sflag [#allocation4], 1
    %16 = vsyncpa %s15, 0
    loop: start=0, step=1, limit=4
    $region2: #{tpu_custom_call.1} parent=1 // loop_pre_header
      _
    $region3: #{tpu_custom_call.1} parent=1 // loop_header
      %s18 = sphi 0, %s22
      %p19 = scmp.ge.s32.totalorder %s18, 4
      %s28 = sphi 0, %s30
      %s31 = sphi 0, %s28
      %s32 = sphi 0, %s31
      %s48 = sphi 0, %s32
      %s52 = sphi 0, %s52
      %s54 = sphi 0, %s52
      %s55 = sphi 0, %s54
      %s69 = sphi 0, %s55
      %s73 = sphi 0, %s73
      %s75 = sphi 0, %s73
      %s76 = sphi 0, %s75
      %s90 = sphi 0, %s76
      %s94 = sphi 0, %s94
      %s96 = sphi 0, %s94
      %s97 = sphi 0, %s96
      %s111 = sphi 0, %s97
      %s115 = sphi 0, %s115
      %s117 = sphi 0, %s115
      %s118 = sphi 0, %s117
      %s132 = sphi 0, %s118
      %s136 = sphi 0, %s136
      %s138 = sphi 0, %s136
      %s139 = sphi 0, %s138
      %s153 = sphi 0, %s139
      %s159 = sphi 0, %s161
      %s162 = sphi 0, %s159
      %s163 = sphi 0, %s162
      %s179 = sphi 0, %s163
    $region4: #{tpu_custom_call.1} parent=1 // loop_header_branch
      %21 = sbr.rel (%p19) target = $region8
    $region5: #{tpu_custom_call.1} parent=1 // loop_body
      %s23 = ssub.s32 %s18, 1
      %s24 = ssub.s32 %s18, 2
      %s25 = sadd.s32 %s18, 1
      %s26 = ssub.s32 %s18, %s25
      %p27 = scmp.eq.s32.totalorder %s26, 0
      %s29 = sadd.s32 %s28, 1
      %s30 = scalar_select %p27, %s28, %s29
      %p33 = pneg %p27
      %p34 = scmp.eq.s32.totalorder %s18, 1
      %p35 = por %p33, %p34
      %p36 = scmp.ne.s32.totalorder %s28, %s31
      %p37 = scmp.eq.s32.totalorder %s18, 0
      %p38 = por %p36, %p37
      %p39 = scmp.ne.s32.totalorder %s28, %s31
      %p40 = scmp.eq.s32.totalorder %s23, 1
      %p41 = por %p39, %p40
      %p42 = scmp.ne.s32.totalorder %s31, %s32
      %p43 = scmp.eq.s32.totalorder %s23, 0
      %p44 = por %p42, %p43
      %p45 = scmp.ne.s32.totalorder %s31, %s32
      %p46 = scmp.eq.s32.totalorder %s24, 1
      %p47 = por %p45, %p46
      %p49 = scmp.ne.s32.totalorder %s32, %s48
      %p50 = scmp.eq.s32.totalorder %s24, 0
      %p51 = por %p49, %p50
      %s53 = sadd.s32 %s52, 1
      %p56 = scmp.eq.s32.totalorder %s18, 1
      %p57 = scmp.ne.s32.totalorder %s52, %s54
      %p58 = scmp.eq.s32.totalorder %s18, 0
      %p59 = por %p57, %p58
      %p60 = scmp.ne.s32.totalorder %s52, %s54
      %p61 = scmp.eq.s32.totalorder %s23, 1
      %p62 = por %p60, %p61
      %p63 = scmp.ne.s32.totalorder %s54, %s55
      %p64 = scmp.eq.s32.totalorder %s23, 0
      %p65 = por %p63, %p64
      %p66 = scmp.ne.s32.totalorder %s54, %s55
      %p67 = scmp.eq.s32.totalorder %s24, 1
      %p68 = por %p66, %p67
      %p70 = scmp.ne.s32.totalorder %s55, %s69
      %p71 = scmp.eq.s32.totalorder %s24, 0
      %p72 = por %p70, %p71
      %s74 = sadd.s32 %s73, 1
      %p77 = scmp.eq.s32.totalorder %s18, 1
      %p78 = scmp.ne.s32.totalorder %s73, %s75
      %p79 = scmp.eq.s32.totalorder %s18, 0
      %p80 = por %p78, %p79
      %p81 = scmp.ne.s32.totalorder %s73, %s75
      %p82 = scmp.eq.s32.totalorder %s23, 1
      %p83 = por %p81, %p82
      %p84 = scmp.ne.s32.totalorder %s75, %s76
      %p85 = scmp.eq.s32.totalorder %s23, 0
      %p86 = por %p84, %p85
      %p87 = scmp.ne.s32.totalorder %s75, %s76
      %p88 = scmp.eq.s32.totalorder %s24, 1
      %p89 = por %p87, %p88
      %p91 = scmp.ne.s32.totalorder %s76, %s90
      %p92 = scmp.eq.s32.totalorder %s24, 0
      %p93 = por %p91, %p92
      %s95 = sadd.s32 %s94, 1
      %p98 = scmp.eq.s32.totalorder %s18, 1
      %p99 = scmp.ne.s32.totalorder %s94, %s96
      %p100 = scmp.eq.s32.totalorder %s18, 0
      %p101 = por %p99, %p100
      %p102 = scmp.ne.s32.totalorder %s94, %s96
      %p103 = scmp.eq.s32.totalorder %s23, 1
      %p104 = por %p102, %p103
      %p105 = scmp.ne.s32.totalorder %s96, %s97
      %p106 = scmp.eq.s32.totalorder %s23, 0
      %p107 = por %p105, %p106
      %p108 = scmp.ne.s32.totalorder %s96, %s97
      %p109 = scmp.eq.s32.totalorder %s24, 1
      %p110 = por %p108, %p109
      %p112 = scmp.ne.s32.totalorder %s97, %s111
      %p113 = scmp.eq.s32.totalorder %s24, 0
      %p114 = por %p112, %p113
      %s116 = sadd.s32 %s115, 1
      %p119 = scmp.eq.s32.totalorder %s18, 1
      %p120 = scmp.ne.s32.totalorder %s115, %s117
      %p121 = scmp.eq.s32.totalorder %s18, 0
      %p122 = por %p120, %p121
      %p123 = scmp.ne.s32.totalorder %s115, %s117
      %p124 = scmp.eq.s32.totalorder %s23, 1
      %p125 = por %p123, %p124
      %p126 = scmp.ne.s32.totalorder %s117, %s118
      %p127 = scmp.eq.s32.totalorder %s23, 0
      %p128 = por %p126, %p127
      %p129 = scmp.ne.s32.totalorder %s117, %s118
      %p130 = scmp.eq.s32.totalorder %s24, 1
      %p131 = por %p129, %p130
      %p133 = scmp.ne.s32.totalorder %s118, %s132
      %p134 = scmp.eq.s32.totalorder %s24, 0
      %p135 = por %p133, %p134
      %s137 = sadd.s32 %s136, 1
      %p140 = scmp.eq.s32.totalorder %s18, 1
      %p141 = scmp.ne.s32.totalorder %s136, %s138
      %p142 = scmp.eq.s32.totalorder %s18, 0
      %p143 = por %p141, %p142
      %p144 = scmp.ne.s32.totalorder %s136, %s138
      %p145 = scmp.eq.s32.totalorder %s23, 1
      %p146 = por %p144, %p145
      %p147 = scmp.ne.s32.totalorder %s138, %s139
      %p148 = scmp.eq.s32.totalorder %s23, 0
      %p149 = por %p147, %p148
      %p150 = scmp.ne.s32.totalorder %s138, %s139
      %p151 = scmp.eq.s32.totalorder %s24, 1
      %p152 = por %p150, %p151
      %p154 = scmp.ne.s32.totalorder %s139, %s153
      %p155 = scmp.eq.s32.totalorder %s24, 0
      %p156 = por %p154, %p155
      %s157 = ssub.s32 %s18, %s25
      %p158 = scmp.eq.s32.totalorder %s157, 0
      %s160 = sadd.s32 %s159, 1
      %s161 = scalar_select %p158, %s159, %s160
      %p164 = pneg %p158
      %p165 = scmp.eq.s32.totalorder %s18, 1
      %p166 = por %p164, %p165
      %p167 = scmp.ne.s32.totalorder %s159, %s162
      %p168 = scmp.eq.s32.totalorder %s18, 0
      %p169 = por %p167, %p168
      %p170 = scmp.ne.s32.totalorder %s159, %s162
      %p171 = scmp.eq.s32.totalorder %s23, 1
      %p172 = por %p170, %p171
      %p173 = scmp.ne.s32.totalorder %s162, %s163
      %p174 = scmp.eq.s32.totalorder %s23, 0
      %p175 = por %p173, %p174
      %p176 = scmp.ne.s32.totalorder %s162, %s163
      %p177 = scmp.eq.s32.totalorder %s24, 1
      %p178 = por %p176, %p177
      %p180 = scmp.ne.s32.totalorder %s163, %s179
      %p181 = scmp.eq.s32.totalorder %s24, 0
      %p182 = por %p180, %p181
      %p183 = scmp.le.s32.totalorder 1, %s18
      %p184 = scmp.lt.s32.totalorder %s18, 3
      %p185 = pnand %p183, %p184
      %p186 = pneg %p185
      // Predicated region
      $region9: #{tpu_custom_call.1} parent=5 // pred_check
        _
      $region10: #{tpu_custom_call.1} parent=5 // pred_check_branch
        %188 = sbr.rel (%p185) target = $region12
      $region11: #{tpu_custom_call.1} parent=5 // pred_region
        %s189 = ssub.s32 %s18, 1
        // Predicated region
        $region13: #{tpu_custom_call.1} parent=11 // pred_check
          %p190 = pneg %p65
        $region14: #{tpu_custom_call.1} parent=11 // pred_check_branch
          %192 = sbr.rel (%p190) target = $region16
        $region15: #{tpu_custom_call.1} parent=11 // pred_region
          _
        $region16: #{tpu_custom_call.1} parent=11 // pred_fallthru
          _
        // Predicated region
        $region17: #{tpu_custom_call.1} parent=11 // pred_check
          %p193 = pneg %p86
        $region18: #{tpu_custom_call.1} parent=11 // pred_check_branch
          %195 = sbr.rel (%p193) target = $region20
        $region19: #{tpu_custom_call.1} parent=11 // pred_region
          _
        $region20: #{tpu_custom_call.1} parent=11 // pred_fallthru
          _
        // Predicated region
        $region21: #{tpu_custom_call.1} parent=11 // pred_check
          %p196 = pneg %p107
        $region22: #{tpu_custom_call.1} parent=11 // pred_check_branch
          %198 = sbr.rel (%p196) target = $region24
        $region23: #{tpu_custom_call.1} parent=11 // pred_region
          _
        $region24: #{tpu_custom_call.1} parent=11 // pred_fallthru
          _
        // Predicated region
        $region25: #{tpu_custom_call.1} parent=11 // pred_check
          %p199 = pneg %p128
        $region26: #{tpu_custom_call.1} parent=11 // pred_check_branch
          %201 = sbr.rel (%p199) target = $region28
        $region27: #{tpu_custom_call.1} parent=11 // pred_region
          _
        $region28: #{tpu_custom_call.1} parent=11 // pred_fallthru
          _
        // Predicated region
        $region29: #{tpu_custom_call.1} parent=11 // pred_check
          %p202 = pneg %p149
        $region30: #{tpu_custom_call.1} parent=11 // pred_check_branch
          %204 = sbr.rel (%p202) target = $region32
        $region31: #{tpu_custom_call.1} parent=11 // pred_region
          _
        $region32: #{tpu_custom_call.1} parent=11 // pred_fallthru
          _
      $region12: #{tpu_custom_call.1} parent=5 // pred_fallthru
        _
      %p205 = scmp.lt.s32.totalorder %s18, 2
      // Predicated region
      $region33: #{tpu_custom_call.1} parent=5 // pred_check
        %p206 = pneg %p205
      $region34: #{tpu_custom_call.1} parent=5 // pred_check_branch
        %208 = sbr.rel (%p206) target = $region36
      $region35: #{tpu_custom_call.1} parent=5 // pred_region
        // Predicated region
        $region37: #{tpu_custom_call.1} parent=35 // pred_check
          %p209 = pneg %p38
        $region38: #{tpu_custom_call.1} parent=35 // pred_check_branch
          %211 = sbr.rel (%p209) target = $region40
        $region39: #{tpu_custom_call.1} parent=35 // pred_region
          %s212 = sand.u32 %s28, 1
          %s213 = scalar_lea.sflag [#allocation3], %s212
          %s214 = sand.u32 %s28, 1
          %s215 = smul.addr %s214, 192
          %s216 = scalar_lea.vmem [#allocation2], %s215
          %218 = vsyncadd %s213, 0
          %s219 = smul.addr %s18, 24
          %s220 = smul.addr %s219, 8
          %s221 = scalar_lea.hbm %s0, %s220
          %s222 = sshll.u32 %s221, 4
          %s223 = int_to_ptr.hbm [resolvable:$true] %s222
          %s224 = sshll.u32 %s216, 4
          %s225 = int_to_ptr.vmem [resolvable:$true] %s224
          %230 = dma.hbm_to_vmem [thread:$0]  %s223, 3072, %s225, %s213, 256, 256, 16
        $region40: #{tpu_custom_call.1} parent=35 // pred_fallthru
          _
      $region36: #{tpu_custom_call.1} parent=5 // pred_fallthru
        _
      %p231 = scmp.le.s32.totalorder 1, %s18
      %p232 = scmp.lt.s32.totalorder %s18, 3
      %p233 = pnand %p231, %p232
      %p234 = pneg %p233
      // Predicated region
      $region41: #{tpu_custom_call.1} parent=5 // pred_check
        _
      $region42: #{tpu_custom_call.1} parent=5 // pred_check_branch
        %236 = sbr.rel (%p233) target = $region44
      $region43: #{tpu_custom_call.1} parent=5 // pred_region
        %s237 = ssub.s32 %s18, 1
        %s238 = sand.u32 %s31, 1
        %s239 = scalar_lea.sflag [#allocation3], %s238
        %s240 = sand.u32 %s31, 1
        %s241 = smul.addr %s240, 192
        %s242 = scalar_lea.vmem [#allocation2], %s241
        // Predicated region
        $region45: #{tpu_custom_call.1} parent=43 // pred_check
          %p243 = pneg %p44
        $region46: #{tpu_custom_call.1} parent=43 // pred_check_branch
          %245 = sbr.rel (%p243) target = $region48
        $region47: #{tpu_custom_call.1} parent=43 // pred_region
          %247 = dma.done %s239, 3072
        $region48: #{tpu_custom_call.1} parent=43 // pred_fallthru
          _
        %s248 = sand.u32 %s31, 1
        %s249 = scalar_lea.sflag [#allocation3], %s248
        %s250 = sand.u32 %s31, 1
        %s251 = smul.addr %s250, 192
        %s252 = scalar_lea.vmem [#allocation2], %s251
        %p253 = pneg %p44
        %p254 = pneg %p41
        %p255 = pneg %p65
        %p256 = pneg %p62
        %p257 = pneg %p86
        %p258 = pneg %p83
        %p259 = pneg %p107
        %p260 = pneg %p104
        %p261 = pneg %p128
        %p262 = pneg %p125
        %p263 = pneg %p149
        %p264 = pneg %p146
        %p265 = pneg %p175
        %p266 = pneg %p172
        %s267 = sand.u32 %s162, 1
        %s268 = scalar_lea.sflag [#allocation4], %s267
        %s269 = sand.u32 %s162, 1
        %s270 = smul.addr %s269, 32
        %s271 = scalar_lea.vmem [#allocation5], %s270
        %v272 = vld [vmem:[%s242] sm:$0xff]
        %v273 = vld [vmem:[%s242 + $0x8] sm:$0xff]
        %v274 = vld [vmem:[%s242 + $0x10] sm:$0xff]
        %v275 = vld [vmem:[%s242 + $0x18] sm:$0xff]
        %v276 = vld [vmem:[%s242 + $0x20] sm:$0xff]
        %v277 = vld [vmem:[%s242 + $0x28] sm:$0xff]
        %v278 = vld [vmem:[%s242 + $0x30] sm:$0xff]
        %v279 = vld [vmem:[%s242 + $0x38] sm:$0xff]
        %v280 = vld [vmem:[%s242 + $0x40] sm:$0xff]
        %v281 = vld [vmem:[%s242 + $0x48] sm:$0xff]
        %v282 = vld [vmem:[%s242 + $0x50] sm:$0xff]
        %v283 = vld [vmem:[%s242 + $0x58] sm:$0xff]
        %v284 = vld [vmem:[%s242 + $0x60] sm:$0xff]
        %v285 = vld [vmem:[%s242 + $0x68] sm:$0xff]
        %v286 = vld [vmem:[%s242 + $0x70] sm:$0xff]
        %v287 = vld [vmem:[%s242 + $0x78] sm:$0xff]
        %v288 = vld [vmem:[%s242 + $0x80] sm:$0xff]
        %v289 = vld [vmem:[%s242 + $0x88] sm:$0xff]
        %v290 = vld [vmem:[%s242 + $0x90] sm:$0xff]
        %v291 = vld [vmem:[%s242 + $0x98] sm:$0xff]
        %v292 = vld [vmem:[%s242 + $0xa0] sm:$0xff]
        %v293 = vld [vmem:[%s242 + $0xa8] sm:$0xff]
        %v294 = vld [vmem:[%s242 + $0xb0] sm:$0xff]
        %v295 = vld [vmem:[%s242 + $0xb8] sm:$0xff]
        %v296 = vadd.f32 %v272, %v273
        %297 = vadd.xlane.f32.xlu0 %v296
        %v298 = vpop.xlane.xlu0 %297
        %v299 = vadd.f32 %v274, %v275
        %300 = vadd.xlane.f32.xlu0 %v299
        %v301 = vpop.xlane.xlu0 %300
        %v302 = vadd.f32 %v276, %v277
        %303 = vadd.xlane.f32.xlu0 %v302
        %v304 = vpop.xlane.xlu0 %303
        %v305 = vadd.f32 %v278, %v279
        %306 = vadd.xlane.f32.xlu0 %v305
        %v307 = vpop.xlane.xlu0 %306
        %v308 = vadd.f32 %v280, %v281
        %309 = vadd.xlane.f32.xlu0 %v308
        %v310 = vpop.xlane.xlu0 %309
        %v311 = vadd.f32 %v282, %v283
        %312 = vadd.xlane.f32.xlu0 %v311
        %v313 = vpop.xlane.xlu0 %312
        %v314 = vadd.f32 %v284, %v285
        %315 = vadd.xlane.f32.xlu0 %v314
        %v316 = vpop.xlane.xlu0 %315
        %v317 = vadd.f32 %v286, %v287
        %318 = vadd.xlane.f32.xlu0 %v317
        %v319 = vpop.xlane.xlu0 %318
        %v320 = vadd.f32 %v288, %v289
        %321 = vadd.xlane.f32.xlu0 %v320
        %v322 = vpop.xlane.xlu0 %321
        %v323 = vadd.f32 %v290, %v291
        %324 = vadd.xlane.f32.xlu0 %v323
        %v325 = vpop.xlane.xlu0 %324
        %v326 = vadd.f32 %v292, %v293
        %327 = vadd.xlane.f32.xlu0 %v326
        %v328 = vpop.xlane.xlu0 %327
        %v329 = vadd.f32 %v294, %v295
        %330 = vadd.xlane.f32.xlu0 %v329
        %v331 = vpop.xlane.xlu0 %330
        %v332 = vmul.f32 %v298, 0.00390625
        %v333 = vmul.f32 %v301, 0.00390625
        %v334 = vmul.f32 %v304, 0.00390625
        %v335 = vmul.f32 %v307, 0.00390625
        %v336 = vmul.f32 %v310, 0.00390625
        %v337 = vmul.f32 %v313, 0.00390625
        %v338 = vmul.f32 %v316, 0.00390625
        %v339 = vmul.f32 %v319, 0.00390625
        %v340 = vmul.f32 %v322, 0.00390625
        %v341 = vmul.f32 %v325, 0.00390625
        %v342 = vmul.f32 %v328, 0.00390625
        %v343 = vmul.f32 %v331, 0.00390625
        %v344 = vld [vmem:[%s1] sm:$0xff]
        %v345 = vld [vmem:[%s1 + $0x8] sm:$0xff]
        %v346 = vld [vmem:[%s1 + $0x10] sm:$0xff]
        %v347 = vld [vmem:[%s1 + $0x18] sm:$0xff]
        %v348 = vld [vmem:[%s1 + $0x20] sm:$0xff]
        %v349 = vld [vmem:[%s1 + $0x28] sm:$0xff]
        %v350 = vld [vmem:[%s1 + $0x30] sm:$0xff]
        %v351 = vld [vmem:[%s1 + $0x38] sm:$0xff]
        %v352 = vld [vmem:[%s1 + $0x40] sm:$0xff]
        %v353 = vld [vmem:[%s1 + $0x48] sm:$0xff]
        %v354 = vld [vmem:[%s1 + $0x50] sm:$0xff]
        %v355 = vld [vmem:[%s1 + $0x58] sm:$0xff]
        %v356 = vld [vmem:[%s2] sm:$0x1]
        %v369 = vlaneseq
        %v370 = vand.u32 %v369, 127
        %v371 = vperm.slane %v332, %v370
        %v372 = vadd.s32 %v370, 4294967288
        %v373 = vperm.slane %v333, %v372
        %vm374 = vcmask 130112
        %v375 = vsel %vm374, %v373, %v371
        %v376 = vadd.s32 %v370, 4294967280
        %v377 = vperm.slane %v334, %v376
        %vm378 = vcmask 195712
        %v379 = vsel %vm378, %v377, %v375
        %v380 = vadd.s32 %v370, 4294967272
        %v381 = vperm.slane %v335, %v380
        %vm382 = vcmask 261312
        %v383 = vsel %vm382, %v381, %v379
        %v384 = vadd.s32 %v370, 4294967264
        %v385 = vperm.slane %v336, %v384
        %vm386 = vcmask 326912
        %v387 = vsel %vm386, %v385, %v383
        %v388 = vadd.s32 %v370, 4294967256
        %v389 = vperm.slane %v337, %v388
        %vm390 = vcmask 392512
        %v391 = vsel %vm390, %v389, %v387
        %v392 = vadd.s32 %v370, 4294967248
        %v393 = vperm.slane %v338, %v392
        %vm394 = vcmask 458112
        %v395 = vsel %vm394, %v393, %v391
        %v396 = vadd.s32 %v370, 4294967240
        %v397 = vperm.slane %v339, %v396
        %vm398 = vcmask 523712
        %v399 = vsel %vm398, %v397, %v395
        %v400 = vadd.s32 %v370, 4294967232
        %v401 = vperm.slane %v340, %v400
        %vm402 = vcmask 589312
        %v403 = vsel %vm402, %v401, %v399
        %v404 = vadd.s32 %v370, 4294967224
        %v405 = vperm.slane %v341, %v404
        %vm406 = vcmask 654912
        %v407 = vsel %vm406, %v405, %v403
        %v408 = vadd.s32 %v370, 4294967216
        %v409 = vperm.slane %v342, %v408
        %vm410 = vcmask 720512
        %v411 = vsel %vm410, %v409, %v407
        %v412 = vadd.s32 %v370, 4294967208
        %v413 = vperm.slane %v343, %v412
        %vm414 = vcmask 786112
        %v415 = vsel %vm414, %v413, %v411
        %vm416 = vcmask 785408
        %v417 = vsel %vm416, %v415, 0
        %419 = vmatpush.msra.mxu0 0.0
        %420 = vmatpush.msra.mxu0 0.0
        %421 = vmatpush.msra.mxu0 0.0
        %422 = vmatpush.msra.mxu0 0.0
        %423 = vmatpush.msra.mxu0 %v355
        %424 = vmatpush.msra.mxu0 %v354
        %425 = vmatpush.msra.mxu0 %v353
        %426 = vmatpush.msra.mxu0 %v352
        %427 = vmatpush.msra.mxu0 %v351
        %428 = vmatpush.msra.mxu0 %v350
        %429 = vmatpush.msra.mxu0 %v349
        %430 = vmatpush.msra.mxu0 %v348
        %431 = vmatpush.msra.mxu0 %v347
        %432 = vmatpush.msra.mxu0 %v346
        %433 = vmatpush.msra.mxu0 %v345
        %434 = vmatpush.msra.mxu0 %v344
        %435 = vmatmul.f32.gmra.mxu0 %v417
        %v436 = vpop.f32.mrf.mxu0
        %v437 = vadd.f32 %v356, %v436
        %438 = vdwg.mxu0
        %v439 = vmax.f32 %v437, 0.0
        %v440 = vld [vmem:[%s3] sm:$0xff]
        %v441 = vld [vmem:[%s3 + $0x8] sm:$0xf]
        %v442 = vld [vmem:[%s4] sm:$0x1]
        %vm443 = vcmask 97280
        %v445 = vsel %vm443, %v439, 0
        %vm447 = vcmask 1043456
        %v449 = vsel %vm447, %v441, 0
        %451 = vmatpush.msra.mxu0 0.0
        %452 = vmatpush.msra.mxu0 0.0
        %453 = vmatpush.msra.mxu0 0.0
        %454 = vmatpush.msra.mxu0 0.0
        %455 = vmatpush.msra.mxu0 0.0
        %456 = vmatpush.msra.mxu0 0.0
        %457 = vmatpush.msra.mxu0 0.0
        %458 = vmatpush.msra.mxu0 0.0
        %459 = vmatpush.msra.mxu0 0.0
        %460 = vmatpush.msra.mxu0 0.0
        %461 = vmatpush.msra.mxu0 0.0
        %462 = vmatpush.msra.mxu0 0.0
        %463 = vmatpush.msra.mxu0 0.0
        %464 = vmatpush.msra.mxu0 0.0
        %465 = vmatpush.msra.mxu0 %v449
        %466 = vmatpush.msra.mxu0 %v440
        %467 = vmatmul.f32.gmra.mxu0 %v445
        %v468 = vpop.f32.mrf.mxu0
        %v469 = vadd.f32 %v442, %v468
        %470 = vdwg.mxu0
        %v471 = vxor.u32 %v469, 2147483648
        %v472 = vmul.f32 %v471, 1.442695
        %v473 = vpow.pop %v472
        %v474 = vadd.f32 %v473, 1.0
        %v475 = vrcp.pop %v474
        %v476 = vmul.f32 %v474, %v475
        %v477 = vsub.f32 1.0, %v476
        %v478 = vmul.f32 %v475, %v477
        %v479 = vadd.f32 %v475, %v478
        %vm480 = vweird.f32 %v474
        %vm481 = vweird.f32 %v475
        %vm482 = vmor %vm480, %vm481
        %v483 = vsel %vm482, %v475, %v479
        %v484 = vand.u32 2147483647, %v474
        %vm485 = vcmp.eq.f32.partialorder %v484, 8.507059e+37
        %v486 = vand.u32 %v474, 2147483648
        %v487 = vor.u32 1.1754944e-38, %v486
        %v488 = vsel %vm485, %v487, %v483
        %v489 = vmul.f32 1.0, %v488
        %v490 = vlaneseq
        %v491 = vshrl.u32 %v490, 7
        %v492 = vmul.u32 %v491, 16
        %vm493 = vcmp.ge.s32.totalorder %v370, %v492
        %v494 = vadd.s32 %v491, 1
        %v495 = vmul.u32 %v494, 16
        %vm496 = vcmp.lt.s32.totalorder %v370, %v495
        %vm497 = vmand %vm493, %vm496
        %v498 = vsel %vm497, 1, 0
        %v499 = vcvt.s32.f32 %v498
        %v500 = vperm.slane %v489, 0
        %v501 = vlaneseq
        %v502 = vshrl.u32 %v501, 7
        %504 = vset.pattern.permute.xlu0 %v502
        %505 = vperm.xlu0 %504, %v500
        %v506 = vpop.permute.xlu0 %505
        %v507 = vmul.f32 %v506, %v499
        %vm508 = vcmask 783360
        %v509 = vsel %vm508, %v507, 0.0
        %v510 = vrot.slane %v509, 4
        %v511 = vadd.f32 %v509, %v510
        %v512 = vrot.slane %v511, 2
        %v513 = vadd.f32 %v511, %v512
        %v514 = vrot.slane %v513, 1
        %v515 = vadd.f32 %v513, %v514
        %v516 = vld [vmem:[%s5] sm:$0xff]
        %v517 = vld [vmem:[%s5 + $0x8] sm:$0xff]
        %v518 = vmul.f32 %v516, %v515
        %v519 = vmul.f32 %v517, %v515
        %v521 = vsel %vm416, %v518, 0
        %v524 = vsel %vm416, %v519, 0
        %526 = vmatpush.msra.mxu0 0.0
        %527 = vmatpush.msra.mxu0 0.0
        %528 = vmatpush.msra.mxu0 0.0
        %529 = vmatpush.msra.mxu0 0.0
        %530 = vmatpush.msra.mxu0 %v294
        %531 = vmatpush.msra.mxu0 %v292
        %532 = vmatpush.msra.mxu0 %v290
        %533 = vmatpush.msra.mxu0 %v288
        %534 = vmatpush.msra.mxu0 %v286
        %535 = vmatpush.msra.mxu0 %v284
        %536 = vmatpush.msra.mxu0 %v282
        %537 = vmatpush.msra.mxu0 %v280
        %538 = vmatpush.msra.mxu0 %v278
        %539 = vmatpush.msra.mxu0 %v276
        %540 = vmatpush.msra.mxu0 %v274
        %541 = vmatpush.msra.mxu0 %v272
        %542 = vmatmul.f32.gmra.mxu0 %v521
        %v543 = vpop.f32.mrf.mxu0
        %v544 = vadd.f32 0.0, %v543
        %545 = vmatmul.f32.gmra.mxu0 %v524
        %v546 = vpop.f32.mrf.mxu0
        %v547 = vadd.f32 0.0, %v546
        %548 = vdwg.mxu0
        %549 = vmatpush.msra.mxu0 0.0
        %550 = vmatpush.msra.mxu0 0.0
        %551 = vmatpush.msra.mxu0 0.0
        %552 = vmatpush.msra.mxu0 0.0
        %553 = vmatpush.msra.mxu0 %v295
        %554 = vmatpush.msra.mxu0 %v293
        %555 = vmatpush.msra.mxu0 %v291
        %556 = vmatpush.msra.mxu0 %v289
        %557 = vmatpush.msra.mxu0 %v287
        %558 = vmatpush.msra.mxu0 %v285
        %559 = vmatpush.msra.mxu0 %v283
        %560 = vmatpush.msra.mxu0 %v281
        %561 = vmatpush.msra.mxu0 %v279
        %562 = vmatpush.msra.mxu0 %v277
        %563 = vmatpush.msra.mxu0 %v275
        %564 = vmatpush.msra.mxu0 %v273
        %565 = vmatmul.f32.gmra.mxu0 %v521
        %v566 = vpop.f32.mrf.mxu0
        %v567 = vadd.f32 0.0, %v566
        %568 = vmatmul.f32.gmra.mxu0 %v524
        %v569 = vpop.f32.mrf.mxu0
        %v570 = vadd.f32 0.0, %v569
        %571 = vdwg.mxu0
        %v572 = vmax.f32 %v544, 0.0
        %v573 = vmax.f32 %v567, 0.0
        %v574 = vmax.f32 %v547, 0.0
        %v575 = vmax.f32 %v570, 0.0
        %576 = vst [vmem:[%s271] sm:$0xff] %v572
        %577 = vst [vmem:[%s271 + $0x8] sm:$0xff] %v573
        %578 = vst [vmem:[%s271 + $0x10] sm:$0xff] %v574
        %579 = vst [vmem:[%s271 + $0x18] sm:$0xff] %v575
        %s580 = sand.u32 %s162, 1
        %s581 = scalar_lea.sflag [#allocation4], %s580
        %s582 = sand.u32 %s162, 1
        %s583 = smul.addr %s582, 32
        %s584 = scalar_lea.vmem [#allocation5], %s583
        // Predicated region
        $region49: #{tpu_custom_call.1} parent=43 // pred_check
          %p585 = pneg %p172
        $region50: #{tpu_custom_call.1} parent=43 // pred_check_branch
          %587 = sbr.rel (%p585) target = $region52
        $region51: #{tpu_custom_call.1} parent=43 // pred_region
          %589 = vsyncadd %s581, 0
          %s590 = smul.addr %s23, 4
          %s591 = smul.addr %s590, 8
          %s592 = scalar_lea.hbm %s6, %s591
          %s593 = sshll.u32 %s584, 4
          %s594 = int_to_ptr.vmem [resolvable:$true] %s593
          %s595 = sshll.u32 %s592, 4
          %s596 = int_to_ptr.hbm [resolvable:$true] %s595
          %601 = dma.vmem_to_hbm [thread:$0]  %s594, 512, %s596, %s581, 256, 256, 16
        $region52: #{tpu_custom_call.1} parent=43 // pred_fallthru
          _
      $region44: #{tpu_custom_call.1} parent=5 // pred_fallthru
        _
      %p602 = scmp.le.s32.totalorder 2, %s18
      // Predicated region
      $region53: #{tpu_custom_call.1} parent=5 // pred_check
        %p603 = pneg %p602
      $region54: #{tpu_custom_call.1} parent=5 // pred_check_branch
        %605 = sbr.rel (%p603) target = $region56
      $region55: #{tpu_custom_call.1} parent=5 // pred_region
        %s606 = ssub.s32 %s18, 2
        // Predicated region
        $region57: #{tpu_custom_call.1} parent=55 // pred_check
          %p607 = pneg %p178
        $region58: #{tpu_custom_call.1} parent=55 // pred_check_branch
          %609 = sbr.rel (%p607) target = $region60
        $region59: #{tpu_custom_call.1} parent=55 // pred_region
          %s610 = sand.u32 %s163, 1
          %s611 = scalar_lea.sflag [#allocation4], %s610
          %s612 = sand.u32 %s163, 1
          %s613 = smul.addr %s612, 32
          %s614 = scalar_lea.vmem [#allocation5], %s613
          %616 = dma.done %s611, 512
        $region60: #{tpu_custom_call.1} parent=55 // pred_fallthru
          _
      $region56: #{tpu_custom_call.1} parent=5 // pred_fallthru
        _
    $region6: #{tpu_custom_call.1} parent=1 // loop_footer
      %s22 = sadd.s32 1, %s18
    $region7: #{tpu_custom_call.1} parent=1 // loop_footer_branch
      %17 = sbr.rel target = $region3
    $region8: #{tpu_custom_call.1} parent=1 // loop_exit
      _
    %617 = vsyncpa [#allocation3], 1
    %s618 = scalar_lea.sflag [#allocation3], 1
    %619 = vsyncpa %s618, 1
    %620 = vsyncpa [#allocation4], 1
    %s621 = scalar_lea.sflag [#allocation4], 1
    %622 = vsyncpa %s621, 1

</llo_original>
